<compile_context>
chip_gen: v7x
topology: tpu7x:2x2x1
jax: 0.10.0
libtpu: 0.0.40
codegen_flags: <defaults>
</compile_context>

<pallas_src>
import math
from functools import partial

import numpy as np
import jax
import jax.numpy as jnp
from jax import lax
from jax.experimental import pallas as pl
from jax.experimental.pallas import tpu as pltpu

# ----------------------------------------------------------------------------
# LowPassFilter: filter construction (host-side, matches torch buffers)
# ----------------------------------------------------------------------------
CUTOFF = 0.5
KERNEL_SIZE = 6
HALF = KERNEL_SIZE // 2            # 3
TAPS = 2 * HALF + 1                # 7


def build_filter(cutoff=CUTOFF, kernel_size=KERNEL_SIZE):
    """Replica of LowPassFilter._build_filter (torch.kaiser_window periodic, beta=12)."""
    half = kernel_size // 2
    t = np.arange(-half, half + 1, dtype=np.float32)
    L = 2 * half + 1
    beta, N = 12.0, float(L)
    n = np.arange(L, dtype=np.float64)
    window = np.i0(beta * np.sqrt(1.0 - ((n - N / 2.0) / (N / 2.0)) ** 2)) / np.i0(beta)
    sinc = np.sin(2.0 * math.pi * cutoff * t) / (math.pi * t + 1e-8)
    sinc[half] = 2.0 * cutoff
    fk = (window.astype(np.float32) * sinc).astype(np.float32)
    return fk / fk.sum()


# Baked into the kernels as compile-time constants (no SMEM taps, no broadcasts).
FILTER_TAPS = tuple(float(v) for v in build_filter())


# ----------------------------------------------------------------------------
# Chip-aware tiling budgets
# ----------------------------------------------------------------------------
def _vmem_budget():
    """(per-block byte budget, vmem_limit_bytes) — conservative for v7x's 64 MiB."""
    kind = ""
    try:
        kind = jax.devices()[0].device_kind.lower()
    except Exception:
        pass
    if "7" in kind:                                   # v7x: 64 MiB VMEM per TC
        return 2 * 1024 * 1024, 40 * 1024 * 1024
    return 4 * 1024 * 1024, 64 * 1024 * 1024          # v5e/v6e: 128 MiB VMEM


def _sublane_align(dtype):
    """Row-tile alignment: 8 for f32, 16 for bf16, 32 for int8/fp8."""
    return max(8, 32 // jnp.dtype(dtype).itemsize)


def _pick_tile(n, bytes_per_unit, align, budget, min_steps=1):
    """Largest multiple of `align` <= n keeping the block under `budget` bytes,
    and (when possible) giving at least `min_steps` grid steps (v7x megacore)."""
    if n <= align:
        return n
    t = budget // max(1, bytes_per_unit)
    t = max(align, (t // align) * align)
    if min_steps > 1 and n >= min_steps * align:
        cap = max(align, ((n // min_steps) // align) * align)
        t = min(t, cap)
    if t >= n:
        return n
    return t


# ----------------------------------------------------------------------------
# Pallas kernels (roll + boundary masks; residual add fused)
# ----------------------------------------------------------------------------
def _lp_lane_kernel(*refs, add_residual):
    """Depthwise 'same' 7-tap conv along the lane (last) axis of a (TR, L) block,
    optionally fused with a residual add (second input, same BlockSpec)."""
    if add_residual:
        x_ref, r_ref, o_ref = refs
    else:
        x_ref, o_ref = refs
        r_ref = None
    x = x_ref[...].astype(jnp.float32)
    rows, l = x.shape
    lane = lax.broadcasted_iota(jnp.int32, (rows, l), 1)
    acc = x * FILTER_TAPS[HALF]
    for k in range(TAPS):
        d = k - HALF                                  # tap offset, -3..3
        if d == 0:
            continue
        shifted = pltpu.roll(x, shift=(-d) % l, axis=1)       # shifted[i] = x[i + d]
        valid = (lane < (l - d)) if d > 0 else (lane >= (-d))  # zero the 'same' halo
        acc = acc + jnp.where(valid, shifted, 0.0) * FILTER_TAPS[k]
    if r_ref is not None:
        acc = acc + r_ref[...].astype(jnp.float32)
    o_ref[...] = acc.astype(o_ref.dtype)


def _lp_sublane_kernel(*refs, add_residual):
    """Depthwise 'same' 7-tap conv along the sublane axis of an (S, TL) block,
    optionally fused with a residual add."""
    if add_residual:
        x_ref, r_ref, o_ref = refs
    else:
        x_ref, o_ref = refs
        r_ref = None
    x = x_ref[...].astype(jnp.float32)
    s, l = x.shape
    row = lax.broadcasted_iota(jnp.int32, (s, l), 0)
    acc = x * FILTER_TAPS[HALF]
    for k in range(TAPS):
        d = k - HALF
        if d == 0:
            continue
        shifted = pltpu.roll(x, shift=(-d) % s, axis=0)
        valid = (row < (s - d)) if d > 0 else (row >= (-d))
        acc = acc + jnp.where(valid, shifted, 0.0) * FILTER_TAPS[k]
    if r_ref is not None:
        acc = acc + r_ref[...].astype(jnp.float32)
    o_ref[...] = acc.astype(o_ref.dtype)


def _lowpass_last_axis(x2d, res2d):
    """x2d: (R, L), conv along the last axis. Grid over row tiles (>=2 steps)."""
    r, l = x2d.shape
    itemsize = jnp.dtype(x2d.dtype).itemsize
    align = _sublane_align(x2d.dtype)
    budget, vmem_limit = _vmem_budget()
    tr = _pick_tile(r, l * itemsize, align, budget, min_steps=2)
    grid = (pl.cdiv(r, tr),)
    spec = pl.BlockSpec((tr, l), lambda i: (i, 0))
    operands = (x2d,) if res2d is None else (x2d, res2d)
    return pl.pallas_call(
        partial(_lp_lane_kernel, add_residual=res2d is not None),
        out_shape=jax.ShapeDtypeStruct((r, l), x2d.dtype),
        grid=grid,
        in_specs=[spec] * len(operands),
        out_specs=spec,
        compiler_params=pltpu.CompilerParams(
            dimension_semantics=("parallel",),
            vmem_limit_bytes=vmem_limit),
    )(*operands)


def _lowpass_axis1(x3d, res3d):
    """x3d: (B, S, L), conv along axis 1 (sublanes). Grid over batch x lane tiles."""
    b, s, l = x3d.shape
    itemsize = jnp.dtype(x3d.dtype).itemsize
    budget, vmem_limit = _vmem_budget()
    min_lane_steps = 2 if b == 1 else 1              # keep both v7x TCs busy
    tl = _pick_tile(l, s * itemsize, 128, budget, min_steps=min_lane_steps)
    grid = (b, pl.cdiv(l, tl))
    spec = pl.BlockSpec((None, s, tl), lambda i, j: (i, 0, j))
    operands = (x3d,) if res3d is None else (x3d, res3d)
    return pl.pallas_call(
        partial(_lp_sublane_kernel, add_residual=res3d is not None),
        out_shape=jax.ShapeDtypeStruct((b, s, l), x3d.dtype),
        grid=grid,
        in_specs=[spec] * len(operands),
        out_specs=spec,
        compiler_params=pltpu.CompilerParams(
            dimension_semantics=("parallel", "parallel"),
            vmem_limit_bytes=vmem_limit),
    )(*operands)


def _lowpass_xla(x, axis):
    """Fused XLA fallback: tiny/odd shapes where Pallas fixed costs dominate."""
    xm = jnp.moveaxis(x, axis, -1).astype(jnp.float32)
    pad = [(0, 0)] * xm.ndim
    pad[-1] = (HALF, HALF)
    xp = jnp.pad(xm, pad)
    ln = xm.shape[-1]
    out = xp[..., 0:ln] * FILTER_TAPS[0]
    for k in range(1, TAPS):
        out = out + xp[..., k:k + ln] * FILTER_TAPS[k]
    return jnp.moveaxis(out, -1, axis).astype(x.dtype)


def low_pass_filter(x, residual=None):
    """Matches LowPassFilter.forward exactly; optionally fuses `+ residual`.
    - shape[2] > shape[1] (strict, mirroring the torch heuristic): conv along
      the last axis (torch's no-transpose branch).
    - otherwise torch transposes, convolves, transposes back == conv along
      axis 1; we convolve axis 1 in place and skip both HBM transposes.
    """
    if x.ndim != 3:
        raise ValueError("LowPassFilter expects a rank-3 input")
    budget, _ = _vmem_budget()
    if x.shape[2] > x.shape[1]:
        b, c, l = x.shape
        rows = b * c
        align = _sublane_align(x.dtype)
        if (l >= 128 and l % 128 == 0 and rows >= align
                and align * l * 4 <= budget):
            x2 = x.reshape(rows, l)
            r2 = None if residual is None else residual.reshape(rows, l)
            return _lowpass_last_axis(x2, r2).reshape(b, c, l)
        # TODO(synk): halo-tiled conv-axis path for very long L.
        out = _lowpass_xla(x, axis=2)
    else:
        b, s, l = x.shape
        if (l >= 128 and s >= 8 and s % 8 == 0
                and s * 128 * 4 <= budget):
            return _lowpass_axis1(x, residual)
        # TODO(synk): halo-tiled conv-axis path for very long S.
        out = _lowpass_xla(x, axis=1)
    return out if residual is None else out + residual


# ----------------------------------------------------------------------------
# Remaining layers of PeriodicTransformerDecoder (plain JAX / XLA)
# ----------------------------------------------------------------------------
def _linear(x, p):
    return x @ p["w"] + p["b"]


def _layer_norm(x, p, eps=1e-5):
    mu = jnp.mean(x, axis=-1, keepdims=True)
    var = jnp.mean(jnp.square(x - mu), axis=-1, keepdims=True)
    return (x - mu) * lax.rsqrt(var + eps) * p["w"] + p["b"]


def _snake(x, alpha, axis=-1):
    shape = [1] * x.ndim
    shape[axis] = alpha.shape[0]
    a = alpha.reshape(shape)
    return x + (1.0 / a) * jnp.square(jnp.sin(a * x))


def _conv1d(x, w, b, dilation=1, padding=0):
    # x: (B, Cin, T), w: (Cout, Cin, K)  (torch Conv1d layout)
    y = lax.conv_general_dilated(
        x, w, window_strides=(1,), padding=[(padding, padding)],
        rhs_dilation=(dilation,), dimension_numbers=("NCH", "OIH", "NCH"))
    return y + b[None, :, None]


def _conv_transpose1d(x, w, b, stride=2, padding=1):
    # x: (B, Cin, T), w: (Cin, Cout, K)  (torch ConvTranspose1d layout)
    k = w.shape[-1]
    w_conv = jnp.flip(w, axis=-1).transpose(1, 0, 2)        # (Cout, Cin, K)
    y = lax.conv_general_dilated(
        x, w_conv, window_strides=(1,),
        padding=[(k - 1 - padding, k - 1 - padding)],
        lhs_dilation=(stride,), dimension_numbers=("NCH", "OIH", "NCH"))
    return y + b[None, :, None]


def _interp_linear(x, out_size):
    # F.interpolate(mode='linear', align_corners=False) along the last axis.
    in_size = x.shape[-1]
    if in_size == out_size:
        return x
    pos = (np.arange(out_size, dtype=np.float64) + 0.5) * (in_size / out_size) - 0.5
    pos = np.clip(pos, 0.0, in_size - 1)
    lo = np.floor(pos).astype(np.int32)
    hi = np.minimum(lo + 1, in_size - 1)
    w_hi = jnp.asarray((pos - lo).astype(np.float32))
    return x[..., lo] * (1.0 - w_hi) + x[..., hi] * w_hi


def _mha(x, p, num_heads, mask=None):
    b, s, e = x.shape
    d = e // num_heads
    qkv = x @ p["in_w"] + p["in_b"]
    q, k, v = jnp.split(qkv, 3, axis=-1)

    def heads(t):
        return t.reshape(b, s, num_heads, d).transpose(0, 2, 1, 3)

    q, k, v = heads(q), heads(k), heads(v)
    att = jnp.einsum("bhqd,bhkd->bhqk", q, k) / math.sqrt(d)
    if mask is not None:                                   # key_padding_mask: True = ignore
        att = jnp.where(mask[:, None, None, :], -jnp.inf, att)
    att = jax.nn.softmax(att, axis=-1)
    o = jnp.einsum("bhqk,bhkd->bhqd", att, v)
    o = o.transpose(0, 2, 1, 3).reshape(b, s, e)
    return o @ p["out_w"] + p["out_b"]


def _transformer_layer(x, p, num_heads, mask=None):
    h = _layer_norm(x, p["norm1"])
    x = x + _mha(h, p["attn"], num_heads, mask)
    # AMPFeedForward: Linear -> Snake -> Linear -> LowPassFilter+residual (Pallas) -> LN
    h = _linear(x, p["ffn1"])
    h = _snake(h, p["ffn_alpha"], axis=-1)
    h = _linear(h, p["ffn2"])
    x = low_pass_filter(h, residual=x)        # residual add fused into the kernel
    return _layer_norm(x, p["ffn_norm"])


def periodic_transformer_decoder(params, x, *, num_heads, freq_bands,
                                 dilation_rates, mask=None):
    b, s, f = x.shape
    p0 = params["initial"]

    # initial_transpose_conv: 1x1 conv -> 2x transposed conv -> Snake -> 1x1 conv
    xc = jnp.swapaxes(x, 1, 2)                              # (B, F, S)
    xc = _conv1d(xc, p0["conv_in_w"], p0["conv_in_b"])
    xc = _conv_transpose1d(xc, p0["up_w"], p0["up_b"], stride=2, padding=1)
    xc = _snake(xc, p0["snake_alpha"], axis=1)
    xc = _conv1d(xc, p0["conv_out_w"], p0["conv_out_b"])

    # AMPBlock: Snake -> dilated conv -> LowPassFilter + residual (fused, Pallas)
    residual = xc
    for blk, d in zip(params["amp"], dilation_rates):
        x_act = _snake(xc, blk["alpha"], axis=1)
        x_conv = _conv1d(x_act, blk["w"], blk["b"], dilation=d, padding=d)
        xc = low_pass_filter(x_conv, residual=residual)     # filter + add in one pass
        residual = xc

    xt = jnp.swapaxes(xc, 1, 2)                             # (B, T2, H)
    if xt.shape[1] != s:
        xt = jnp.swapaxes(_interp_linear(jnp.swapaxes(xt, 1, 2), s), 1, 2)

    h = _linear(xt, params["to_transformer"])
    for lyr in params["layers"]:
        h = _transformer_layer(h, lyr, num_heads, mask)

    band_w = jax.nn.softmax(_linear(h, params["band_mixer"]), axis=-1)
    comps = []
    for i, fe in enumerate(params["freq_extractors"]):
        c = _linear(h, fe["l1"])
        c = _snake(c, fe["alpha"], axis=-1)
        c = _linear(c, fe["l2"])
        comps.append(c * band_w[:, :, i:i + 1])
    out = _linear(jnp.concatenate(comps, axis=-1), params["out_proj"])
    assert out.shape == (b, s, f)
    return out


# ----------------------------------------------------------------------------
# Deterministic parameter construction
# ----------------------------------------------------------------------------
def _init_params(key, *, input_dim, hidden_dim, num_layers, num_heads,
                 freq_bands, dilation_rates):
    keys = iter(jax.random.split(key, 256))

    def nrm(shape, scale=0.05):
        return scale * jax.random.normal(next(keys), shape, jnp.float32)

    def linear(i, o):
        return {"w": nrm((i, o)), "b": jnp.zeros((o,), jnp.float32)}

    params = {
        "initial": {
            "conv_in_w": nrm((hidden_dim, input_dim, 1)),
            "conv_in_b": jnp.zeros((hidden_dim,), jnp.float32),
            "up_w": nrm((hidden_dim, hidden_dim, 4)),
            "up_b": jnp.zeros((hidden_dim,), jnp.float32),
            "snake_alpha": jnp.ones((hidden_dim,), jnp.float32),
            "conv_out_w": nrm((hidden_dim, hidden_dim, 1)),
            "conv_out_b": jnp.zeros((hidden_dim,), jnp.float32),
        },
        "amp": [
            {"w": nrm((hidden_dim, hidden_dim, 3)),
             "b": jnp.zeros((hidden_dim,), jnp.float32),
             "alpha": jnp.ones((hidden_dim,), jnp.float32) * (1.0 + 0.25 * i)}
            for i in range(len(dilation_rates))],
        "to_transformer": linear(hidden_dim, hidden_dim),
    }
    layers = []
    for i in range(num_layers):
        a0 = 1.0 + 0.5 * i
        layers.append({
            "norm1": {"w": jnp.ones((hidden_dim,), jnp.float32),
                      "b": jnp.zeros((hidden_dim,), jnp.float32)},
            "attn": {"in_w": nrm((hidden_dim, 3 * hidden_dim)),
                     "in_b": jnp.zeros((3 * hidden_dim,), jnp.float32),
                     "out_w": nrm((hidden_dim, hidden_dim)),
                     "out_b": jnp.zeros((hidden_dim,), jnp.float32)},
            "ffn1": linear(hidden_dim, 4 * hidden_dim),
            "ffn_alpha": jnp.ones((4 * hidden_dim,), jnp.float32) * a0,
            "ffn2": linear(4 * hidden_dim, hidden_dim),
            "ffn_norm": {"w": jnp.ones((hidden_dim,), jnp.float32),
                         "b": jnp.zeros((hidden_dim,), jnp.float32)},
        })
    params["layers"] = layers
    fes = []
    for i in range(freq_bands):
        out_i = input_dim // freq_bands + (1 if i < input_dim % freq_bands else 0)
        fes.append({"l1": linear(hidden_dim, hidden_dim // 2),
                    "alpha": jnp.ones((hidden_dim // 2,), jnp.float32) * (1.0 + 0.5 * i),
                    "l2": linear(hidden_dim // 2, out_i)})
    params["freq_extractors"] = fes
    params["band_mixer"] = linear(hidden_dim, freq_bands)
    params["out_proj"] = linear(input_dim, input_dim)
    return params


# ----------------------------------------------------------------------------
# Main
# ----------------------------------------------------------------------------
if __name__ == "__main__":
    INPUT_DIM, HIDDEN_DIM = 12, 128
    NUM_LAYERS, NUM_HEADS, FREQ_BANDS = 2, 4, 3
    DILATIONS = (1, 3, 5, 7)
    BATCH, SEQ = 2, 64

    root = jax.random.PRNGKey(0)
    pkey, xkey, ka, kra, kb, krb, kc = jax.random.split(root, 7)
    params = _init_params(pkey, input_dim=INPUT_DIM, hidden_dim=HIDDEN_DIM,
                          num_layers=NUM_LAYERS, num_heads=NUM_HEADS,
                          freq_bands=FREQ_BANDS, dilation_rates=DILATIONS)

    # --- standalone check of both Pallas low-pass kernel variants vs numpy ---
    filt = np.asarray(FILTER_TAPS, dtype=np.float32)

    def lp_ref(xn, axis):
        pad = [(0, 0)] * xn.ndim
        pad[axis] = (HALF, HALF)
        xp = np.pad(xn, pad)
        out = np.zeros_like(xn)
        ln = xn.shape[axis]
        for k in range(TAPS):
            sl = [slice(None)] * xn.ndim
            sl[axis] = slice(k, k + ln)
            out = out + xp[tuple(sl)] * filt[k]
        return out

    # Pallas lane-axis kernel (conv along last axis) with fused residual.
    xa = jax.random.normal(ka, (4, 16, 256), jnp.float32)
    ra = jax.random.normal(kra, (4, 16, 256), jnp.float32)
    ya = jax.block_until_ready(low_pass_filter(xa, residual=ra))
    np.testing.assert_allclose(np.asarray(ya),
                               lp_ref(np.asarray(xa), axis=2) + np.asarray(ra),
                               rtol=1e-5, atol=1e-5)

    # Pallas sublane-axis kernel (torch transpose branch) with fused residual.
    xb = jax.random.normal(kb, (2, 256, 128), jnp.float32)
    rb = jax.random.normal(krb, (2, 256, 128), jnp.float32)
    yb = jax.block_until_ready(low_pass_filter(xb, residual=rb))
    np.testing.assert_allclose(np.asarray(yb),
                               lp_ref(np.asarray(xb), axis=1) + np.asarray(rb),
                               rtol=1e-5, atol=1e-5)

    # Small-tensor XLA fallback (lane extent < 128 -> skip Pallas fixed costs).
    xs = jax.random.normal(kc, (2, 16, 32), jnp.float32)
    ys = jax.block_until_ready(low_pass_filter(xs))
    np.testing.assert_allclose(np.asarray(ys), lp_ref(np.asarray(xs), axis=2),
                               rtol=1e-5, atol=1e-5)

    # --- full decoder forward (both Pallas paths are exercised inside) ---
    x = jax.random.normal(xkey, (BATCH, SEQ, INPUT_DIM), jnp.float32)
    fwd = jax.jit(partial(periodic_transformer_decoder,
                          num_heads=NUM_HEADS, freq_bands=FREQ_BANDS,
                          dilation_rates=DILATIONS))
    out = jax.block_until_ready(fwd(params, x))
    assert out.shape == x.shape, (out.shape, x.shape)
    assert bool(jnp.all(jnp.isfinite(out)))
    print("KERNEL_OK")
</pallas_src>

<mosaic_0001>
module attributes {stable_mosaic.version = 11 : i64} {
  func.func @_lp_lane_kernel(%arg0: i32, %arg1: memref<32x256xf32, #tpu.memory_space<vmem>>, %arg2: memref<32x256xf32, #tpu.memory_space<vmem>>, %arg3: memref<32x256xf32, #tpu.memory_space<vmem>>) attributes {dimension_semantics = [#tpu.dimension_semantics<parallel>], iteration_bounds = array<i64: 2>, scalar_prefetch = 0 : i64, scratch_operands = 0 : i64, tpu.core_type = #tpu.core_type<tc>, window_params = [{transform_indices = @transform_0, window_bounds = array<i64: 32, 256>}, {transform_indices = @transform_1, window_bounds = array<i64: 32, 256>}, {transform_indices = @transform_2, window_bounds = array<i64: 32, 256>}]} {
    %c0 = arith.constant 0 : index
    %c0_0 = arith.constant 0 : index
    %0 = vector.load %arg1[%c0, %c0_0] : memref<32x256xf32, #tpu.memory_space<vmem>>, vector<32x256xf32>
    %1 = tpu.iota {dimensions = array<i32: 1>} : vector<32x256xi32>
    %cst = arith.constant 1.000000e+00 : f32
    %2 = vector.broadcast %cst : f32 to vector<32x256xf32>
    %3 = arith.mulf %0, %2 : vector<32x256xf32>
    %c3_i32 = arith.constant 3 : i32
    %4 = tpu.dynamic_rotate %0 by %c3_i32 dim 1 : vector<32x256xf32>, i32 -> vector<32x256xf32>
    %c3_i32_1 = arith.constant 3 : i32
    %5 = vector.broadcast %c3_i32_1 : i32 to vector<32x256xi32>
    %6 = arith.cmpi sge, %1, %5 : vector<32x256xi32>
    %cst_2 = arith.constant 0.000000e+00 : f32
    %7 = vector.broadcast %cst_2 : f32 to vector<32x256xf32>
    %8 = arith.select %6, %4, %7 : vector<32x256xi1>, vector<32x256xf32>
    %cst_3 = arith.constant -1.50241947E-13 : f32
    %9 = vector.broadcast %cst_3 : f32 to vector<32x256xf32>
    %10 = arith.mulf %8, %9 : vector<32x256xf32>
    %11 = arith.addf %3, %10 : vector<32x256xf32>
    %c2_i32 = arith.constant 2 : i32
    %12 = tpu.dynamic_rotate %0 by %c2_i32 dim 1 : vector<32x256xf32>, i32 -> vector<32x256xf32>
    %c2_i32_4 = arith.constant 2 : i32
    %13 = vector.broadcast %c2_i32_4 : i32 to vector<32x256xi32>
    %14 = arith.cmpi sge, %1, %13 : vector<32x256xi32>
    %cst_5 = arith.constant 0.000000e+00 : f32
    %15 = vector.broadcast %cst_5 : f32 to vector<32x256xf32>
    %16 = arith.select %14, %12, %15 : vector<32x256xi1>, vector<32x256xf32>
    %cst_6 = arith.constant 1.02586772E-9 : f32
    %17 = vector.broadcast %cst_6 : f32 to vector<32x256xf32>
    %18 = arith.mulf %16, %17 : vector<32x256xf32>
    %19 = arith.addf %11, %18 : vector<32x256xf32>
    %c1_i32 = arith.constant 1 : i32
    %20 = tpu.dynamic_rotate %0 by %c1_i32 dim 1 : vector<32x256xf32>, i32 -> vector<32x256xf32>
    %c1_i32_7 = arith.constant 1 : i32
    %21 = vector.broadcast %c1_i32_7 : i32 to vector<32x256xi32>
    %22 = arith.cmpi sge, %1, %21 : vector<32x256xi32>
    %cst_8 = arith.constant 0.000000e+00 : f32
    %23 = vector.broadcast %cst_8 : f32 to vector<32x256xf32>
    %24 = arith.select %22, %20, %23 : vector<32x256xi1>, vector<32x256xf32>
    %cst_9 = arith.constant -1.03593516E-8 : f32
    %25 = vector.broadcast %cst_9 : f32 to vector<32x256xf32>
    %26 = arith.mulf %24, %25 : vector<32x256xf32>
    %27 = arith.addf %19, %26 : vector<32x256xf32>
    %c255_i32 = arith.constant 255 : i32
    %28 = tpu.dynamic_rotate %0 by %c255_i32 dim 1 : vector<32x256xf32>, i32 -> vector<32x256xf32>
    %c255_i32_10 = arith.constant 255 : i32
    %29 = vector.broadcast %c255_i32_10 : i32 to vector<32x256xi32>
    %30 = arith.cmpi slt, %1, %29 : vector<32x256xi32>
    %cst_11 = arith.constant 0.000000e+00 : f32
    %31 = vector.broadcast %cst_11 : f32 to vector<32x256xf32>
    %32 = arith.select %30, %28, %31 : vector<32x256xi1>, vector<32x256xf32>
    %cst_12 = arith.constant -2.78275341E-8 : f32
    %33 = vector.broadcast %cst_12 : f32 to vector<32x256xf32>
    %34 = arith.mulf %32, %33 : vector<32x256xf32>
    %35 = arith.addf %27, %34 : vector<32x256xf32>
    %c254_i32 = arith.constant 254 : i32
    %36 = tpu.dynamic_rotate %0 by %c254_i32 dim 1 : vector<32x256xf32>, i32 -> vector<32x256xf32>
    %c254_i32_13 = arith.constant 254 : i32
    %37 = vector.broadcast %c254_i32_13 : i32 to vector<32x256xi32>
    %38 = arith.cmpi slt, %1, %37 : vector<32x256xi32>
    %cst_14 = arith.constant 0.000000e+00 : f32
    %39 = vector.broadcast %cst_14 : f32 to vector<32x256xf32>
    %40 = arith.select %38, %36, %39 : vector<32x256xi1>, vector<32x256xf32>
    %cst_15 = arith.constant 1.03593516E-8 : f32
    %41 = vector.broadcast %cst_15 : f32 to vector<32x256xf32>
    %42 = arith.mulf %40, %41 : vector<32x256xf32>
    %43 = arith.addf %35, %42 : vector<32x256xf32>
    %c253_i32 = arith.constant 253 : i32
    %44 = tpu.dynamic_rotate %0 by %c253_i32 dim 1 : vector<32x256xf32>, i32 -> vector<32x256xf32>
    %c253_i32_16 = arith.constant 253 : i32
    %45 = vector.broadcast %c253_i32_16 : i32 to vector<32x256xi32>
    %46 = arith.cmpi slt, %1, %45 : vector<32x256xi32>
    %cst_17 = arith.constant 0.000000e+00 : f32
    %47 = vector.broadcast %cst_17 : f32 to vector<32x256xf32>
    %48 = arith.select %46, %44, %47 : vector<32x256xi1>, vector<32x256xf32>
    %cst_18 = arith.constant -9.328880e-11 : f32
    %49 = vector.broadcast %cst_18 : f32 to vector<32x256xf32>
    %50 = arith.mulf %48, %49 : vector<32x256xf32>
    %51 = arith.addf %43, %50 : vector<32x256xf32>
    %c0_19 = arith.constant 0 : index
    %c0_20 = arith.constant 0 : index
    %52 = vector.load %arg2[%c0_19, %c0_20] : memref<32x256xf32, #tpu.memory_space<vmem>>, vector<32x256xf32>
    %53 = arith.addf %51, %52 : vector<32x256xf32>
    %c0_21 = arith.constant 0 : index
    %c0_22 = arith.constant 0 : index
    %54 = vector.load %arg3[%c0_21, %c0_22] : memref<32x256xf32, #tpu.memory_space<vmem>>, vector<32x256xf32>
    tpu.vector_store %arg3[%c0_21, %c0_22], %53 {strides = array<i32>} : memref<32x256xf32, #tpu.memory_space<vmem>>, vector<32x256xf32>,
    return
  }
  func.func @transform_0(%arg0: i32) -> (i32, i32) {
    %c0_i32 = arith.constant 0 : i32
    %c0_i32_0 = arith.constant 0 : i32
    return %arg0, %c0_i32 : i32, i32
  }
  func.func @transform_1(%arg0: i32) -> (i32, i32) {
    %c0_i32 = arith.constant 0 : i32
    %c0_i32_0 = arith.constant 0 : i32
    return %arg0, %c0_i32 : i32, i32
  }
  func.func @transform_2(%arg0: i32) -> (i32, i32) {
    %c0_i32 = arith.constant 0 : i32
    %c0_i32_0 = arith.constant 0 : i32
    return %arg0, %c0_i32 : i32, i32
  }
}

</mosaic_0001>

<llo_original>
// kernel: tpu_custom_call.1
$region0: #{tpu_custom_call.1}
  #allocation0 [shape = 'u32[]', space=smem, size = 0x4, offset = 0x4, fixed_abs, tag = 'smem constant byte address 0x4 - core index']
  #allocation1 [shape = 'u32[144,128]{1,0:T(1,128)}', space=vmem, size = 0x12000, scoped, tag = 'internal scratch']
  %s0 = inlined_call_operand.hbm [shape: f32[64,256], index: 0, kind: input, shape index: {}]
  %s1 = inlined_call_operand.hbm [shape: f32[64,256], index: 1, kind: input, shape index: {}]
  %s2 = inlined_call_operand.hbm [shape: f32[64,256], index: 2, kind: output, shape index: {}]
  %s3 = sld [smem:[#allocation0]]
  $region49: #{tpu_custom_call.1} parent=0
    _
  %s5 = ssub.s32 1, %s3
  %s6 = scalar_select 0, %s5, %s3
  $region1: #{tpu_custom_call.1} parent=0
    #allocation2 [shape = 'u8[65536]{0}', space=vmem, size = 0x10000, scoped, tag = 'input window, operand 0']
    #allocation3 [shape = 's32[2]{0}', space=sflag, size = 0x8, scoped, tag = 'scoped memory for tpu_custom_call.1']
    #allocation4 [shape = 's32[2]{0}', space=sflag, size = 0x8, scoped, tag = 'scoped memory for tpu_custom_call.1']
    #allocation5 [shape = 'u8[65536]{0}', space=vmem, size = 0x10000, scoped, tag = 'input window, operand 1']
    #allocation6 [shape = 's32[2]{0}', space=sflag, size = 0x8, scoped, tag = 'scoped memory for tpu_custom_call.1']
    #allocation7 [shape = 'u8[65536]{0}', space=vmem, size = 0x10000, scoped, tag = 'output window, operand 0']
    %7 = vsyncpa [#allocation3], 0
    %s8 = scalar_lea.sflag [#allocation3], 1
    %9 = vsyncpa %s8, 0
    %10 = vsyncpa [#allocation6], 0
    %s11 = scalar_lea.sflag [#allocation6], 1
    %12 = vsyncpa %s11, 0
    %13 = vsyncpa [#allocation4], 0
    %s14 = scalar_lea.sflag [#allocation4], 1
    %15 = vsyncpa %s14, 0
    loop: start=0, step=1, limit=4
    $region2: #{tpu_custom_call.1} parent=1 // loop_pre_header
      _
    $region3: #{tpu_custom_call.1} parent=1 // loop_header
      %s17 = sphi 0, %s21
      %p18 = scmp.ge.s32.totalorder %s17, 4
      %s27 = sphi 0, %s29
      %s30 = sphi 0, %s27
      %s31 = sphi 0, %s30
      %s47 = sphi 0, %s31
      %s53 = sphi 0, %s55
      %s56 = sphi 0, %s53
      %s57 = sphi 0, %s56
      %s73 = sphi 0, %s57
      %s79 = sphi 0, %s81
      %s82 = sphi 0, %s79
      %s83 = sphi 0, %s82
      %s99 = sphi 0, %s83
    $region4: #{tpu_custom_call.1} parent=1 // loop_header_branch
      %20 = sbr.rel (%p18) target = $region8
    $region5: #{tpu_custom_call.1} parent=1 // loop_body
      %s22 = ssub.s32 %s17, 1
      %s23 = ssub.s32 %s17, 2
      %s24 = sadd.s32 %s17, 1
      %s25 = ssub.s32 %s17, %s24
      %p26 = scmp.eq.s32.totalorder %s25, 0
      %s28 = sadd.s32 %s27, 1
      %s29 = scalar_select %p26, %s27, %s28
      %p32 = pneg %p26
      %p33 = scmp.eq.s32.totalorder %s17, 1
      %p34 = por %p32, %p33
      %p35 = scmp.ne.s32.totalorder %s27, %s30
      %p36 = scmp.eq.s32.totalorder %s17, 0
      %p37 = por %p35, %p36
      %p38 = scmp.ne.s32.totalorder %s27, %s30
      %p39 = scmp.eq.s32.totalorder %s22, 1
      %p40 = por %p38, %p39
      %p41 = scmp.ne.s32.totalorder %s30, %s31
      %p42 = scmp.eq.s32.totalorder %s22, 0
      %p43 = por %p41, %p42
      %p44 = scmp.ne.s32.totalorder %s30, %s31
      %p45 = scmp.eq.s32.totalorder %s23, 1
      %p46 = por %p44, %p45
      %p48 = scmp.ne.s32.totalorder %s31, %s47
      %p49 = scmp.eq.s32.totalorder %s23, 0
      %p50 = por %p48, %p49
      %s51 = ssub.s32 %s17, %s24
      %p52 = scmp.eq.s32.totalorder %s51, 0
      %s54 = sadd.s32 %s53, 1
      %s55 = scalar_select %p52, %s53, %s54
      %p58 = pneg %p52
      %p59 = scmp.eq.s32.totalorder %s17, 1
      %p60 = por %p58, %p59
      %p61 = scmp.ne.s32.totalorder %s53, %s56
      %p62 = scmp.eq.s32.totalorder %s17, 0
      %p63 = por %p61, %p62
      %p64 = scmp.ne.s32.totalorder %s53, %s56
      %p65 = scmp.eq.s32.totalorder %s22, 1
      %p66 = por %p64, %p65
      %p67 = scmp.ne.s32.totalorder %s56, %s57
      %p68 = scmp.eq.s32.totalorder %s22, 0
      %p69 = por %p67, %p68
      %p70 = scmp.ne.s32.totalorder %s56, %s57
      %p71 = scmp.eq.s32.totalorder %s23, 1
      %p72 = por %p70, %p71
      %p74 = scmp.ne.s32.totalorder %s57, %s73
      %p75 = scmp.eq.s32.totalorder %s23, 0
      %p76 = por %p74, %p75
      %s77 = ssub.s32 %s17, %s24
      %p78 = scmp.eq.s32.totalorder %s77, 0
      %s80 = sadd.s32 %s79, 1
      %s81 = scalar_select %p78, %s79, %s80
      %p84 = pneg %p78
      %p85 = scmp.eq.s32.totalorder %s17, 1
      %p86 = por %p84, %p85
      %p87 = scmp.ne.s32.totalorder %s79, %s82
      %p88 = scmp.eq.s32.totalorder %s17, 0
      %p89 = por %p87, %p88
      %p90 = scmp.ne.s32.totalorder %s79, %s82
      %p91 = scmp.eq.s32.totalorder %s22, 1
      %p92 = por %p90, %p91
      %p93 = scmp.ne.s32.totalorder %s82, %s83
      %p94 = scmp.eq.s32.totalorder %s22, 0
      %p95 = por %p93, %p94
      %p96 = scmp.ne.s32.totalorder %s82, %s83
      %p97 = scmp.eq.s32.totalorder %s23, 1
      %p98 = por %p96, %p97
      %p100 = scmp.ne.s32.totalorder %s83, %s99
      %p101 = scmp.eq.s32.totalorder %s23, 0
      %p102 = por %p100, %p101
      %p103 = scmp.le.s32.totalorder 1, %s17
      %p104 = scmp.lt.s32.totalorder %s17, 3
      %p105 = pnand %p103, %p104
      %p106 = pneg %p105
      // Predicated region
      $region9: #{tpu_custom_call.1} parent=5 // pred_check
        _
      $region10: #{tpu_custom_call.1} parent=5 // pred_check_branch
        %108 = sbr.rel (%p105) target = $region12
      $region11: #{tpu_custom_call.1} parent=5 // pred_region
        %s109 = ssub.s32 %s17, 1
      $region12: #{tpu_custom_call.1} parent=5 // pred_fallthru
        _
      %p110 = scmp.lt.s32.totalorder %s17, 2
      // Predicated region
      $region13: #{tpu_custom_call.1} parent=5 // pred_check
        %p111 = pneg %p110
      $region14: #{tpu_custom_call.1} parent=5 // pred_check_branch
        %113 = sbr.rel (%p111) target = $region16
      $region15: #{tpu_custom_call.1} parent=5 // pred_region
        // Predicated region
        $region17: #{tpu_custom_call.1} parent=15 // pred_check
          %p114 = pneg %p37
        $region18: #{tpu_custom_call.1} parent=15 // pred_check_branch
          %116 = sbr.rel (%p114) target = $region20
        $region19: #{tpu_custom_call.1} parent=15 // pred_region
          %s117 = sand.u32 %s27, 1
          %s118 = scalar_lea.sflag [#allocation3], %s117
          %s119 = sand.u32 %s27, 1
          %s120 = smul.addr %s119, 64
          %s121 = scalar_lea.vmem [#allocation2], %s120
          %s122 = smul.u32 4, %s17
          %s124 = ssub.s32 1024, 1024
          %125 = vsyncadd %s118, %s124
          %s126 = smul.addr %s122, 2
          %s127 = smul.addr %s126, 128
          %s128 = scalar_lea.hbm %s0, %s127
          %s129 = sshll.u32 %s121, 4
          %s130 = int_to_ptr.vmem [resolvable:$true] %s129
          %135 = dma.hbm_to_vmem [thread:$0]  %s128, 1024, %s130, %s118, 256, 256, 16
        $region20: #{tpu_custom_call.1} parent=15 // pred_fallthru
          _
        // Predicated region
        $region21: #{tpu_custom_call.1} parent=15 // pred_check
          %p136 = pneg %p63
        $region22: #{tpu_custom_call.1} parent=15 // pred_check_branch
          %138 = sbr.rel (%p136) target = $region24
        $region23: #{tpu_custom_call.1} parent=15 // pred_region
          %s139 = sand.u32 %s53, 1
          %s140 = scalar_lea.sflag [#allocation6], %s139
          %s141 = sand.u32 %s53, 1
          %s142 = smul.addr %s141, 64
          %s143 = scalar_lea.vmem [#allocation5], %s142
          %s144 = smul.u32 4, %s17
          %s146 = ssub.s32 1024, 1024
          %147 = vsyncadd %s140, %s146
          %s148 = smul.addr %s144, 2
          %s149 = smul.addr %s148, 128
          %s150 = scalar_lea.hbm %s1, %s149
          %s151 = sshll.u32 %s143, 4
          %s152 = int_to_ptr.vmem [resolvable:$true] %s151
          %157 = dma.hbm_to_vmem [thread:$0]  %s150, 1024, %s152, %s140, 256, 256, 16
        $region24: #{tpu_custom_call.1} parent=15 // pred_fallthru
          _
      $region16: #{tpu_custom_call.1} parent=5 // pred_fallthru
        _
      %p158 = scmp.le.s32.totalorder 1, %s17
      %p159 = scmp.lt.s32.totalorder %s17, 3
      %p160 = pnand %p158, %p159
      %p161 = pneg %p160
      // Predicated region
      $region25: #{tpu_custom_call.1} parent=5 // pred_check
        _
      $region26: #{tpu_custom_call.1} parent=5 // pred_check_branch
        %163 = sbr.rel (%p160) target = $region28
      $region27: #{tpu_custom_call.1} parent=5 // pred_region
        %s164 = ssub.s32 %s17, 1
        %s165 = sand.u32 %s30, 1
        %s166 = scalar_lea.sflag [#allocation3], %s165
        %s167 = sand.u32 %s30, 1
        %s168 = smul.addr %s167, 64
        %s169 = scalar_lea.vmem [#allocation2], %s168
        // Predicated region
        $region29: #{tpu_custom_call.1} parent=27 // pred_check
          %p170 = pneg %p43
        $region30: #{tpu_custom_call.1} parent=27 // pred_check_branch
          %172 = sbr.rel (%p170) target = $region32
        $region31: #{tpu_custom_call.1} parent=27 // pred_region
          %173 = dma.done %s166, 1024
        $region32: #{tpu_custom_call.1} parent=27 // pred_fallthru
          _
        %s174 = sand.u32 %s56, 1
        %s175 = scalar_lea.sflag [#allocation6], %s174
        %s176 = sand.u32 %s56, 1
        %s177 = smul.addr %s176, 64
        %s178 = scalar_lea.vmem [#allocation5], %s177
        // Predicated region
        $region33: #{tpu_custom_call.1} parent=27 // pred_check
          %p179 = pneg %p69
        $region34: #{tpu_custom_call.1} parent=27 // pred_check_branch
          %181 = sbr.rel (%p179) target = $region36
        $region35: #{tpu_custom_call.1} parent=27 // pred_region
          %182 = dma.done %s175, 1024
        $region36: #{tpu_custom_call.1} parent=27 // pred_fallthru
          _
        %s183 = sand.u32 %s30, 1
        %s184 = scalar_lea.sflag [#allocation3], %s183
        %s185 = sand.u32 %s30, 1
        %s186 = smul.addr %s185, 64
        %s187 = scalar_lea.vmem [#allocation2], %s186
        %p188 = pneg %p43
        %p189 = pneg %p40
        %s190 = sand.u32 %s56, 1
        %s191 = scalar_lea.sflag [#allocation6], %s190
        %s192 = sand.u32 %s56, 1
        %s193 = smul.addr %s192, 64
        %s194 = scalar_lea.vmem [#allocation5], %s193
        %p195 = pneg %p69
        %p196 = pneg %p66
        %p197 = pneg %p95
        %p198 = pneg %p92
        %s199 = sand.u32 %s82, 1
        %s200 = scalar_lea.sflag [#allocation4], %s199
        %s201 = sand.u32 %s82, 1
        %s202 = smul.addr %s201, 64
        %s203 = scalar_lea.vmem [#allocation7], %s202
        %s204 = smul.u32 4, %s22
        %s205 = smul.u32 4, %s22
        %s206 = smul.u32 4, %s22
        %v207 = vld [vmem:[%s169] sm:$0xff]
        %v208 = vld [vmem:[%s169 + $0x8] sm:$0xff]
        %v209 = vld [vmem:[%s169 + $0x10] sm:$0xff]
        %v210 = vld [vmem:[%s169 + $0x18] sm:$0xff]
        %v211 = vld [vmem:[%s169 + $0x20] sm:$0xff]
        %v212 = vld [vmem:[%s169 + $0x28] sm:$0xff]
        %v213 = vld [vmem:[%s169 + $0x30] sm:$0xff]
        %v214 = vld [vmem:[%s169 + $0x38] sm:$0xff]
        %v215 = vlaneseq
        %v216 = vand.u32 %v215, 127
        %v217 = vadd.s32 %v216, 128
        %218 = vrot.lane.b32.xlu0 %v207, 3
        %v219 = vpop.permute.xlu0 %218
        %220 = vrot.lane.b32.xlu0 %v209, 3
        %v221 = vpop.permute.xlu0 %220
        %222 = vrot.lane.b32.xlu0 %v211, 3
        %v223 = vpop.permute.xlu0 %222
        %224 = vrot.lane.b32.xlu0 %v213, 3
        %v225 = vpop.permute.xlu0 %224
        %226 = vrot.lane.b32.xlu0 %v208, 3
        %v227 = vpop.permute.xlu0 %226
        %228 = vrot.lane.b32.xlu0 %v210, 3
        %v229 = vpop.permute.xlu0 %228
        %230 = vrot.lane.b32.xlu0 %v212, 3
        %v231 = vpop.permute.xlu0 %230
        %232 = vrot.lane.b32.xlu0 %v214, 3
        %v233 = vpop.permute.xlu0 %232
        %vm234 = vcmp.lt.s32.totalorder %v216, 3
        %v235 = vsel %vm234, %v219, %v227
        %v236 = vsel %vm234, %v221, %v229
        %v237 = vsel %vm234, %v223, %v231
        %v238 = vsel %vm234, %v225, %v233
        %v239 = vsel %vm234, %v227, %v219
        %v240 = vsel %vm234, %v229, %v221
        %v241 = vsel %vm234, %v231, %v223
        %v242 = vsel %vm234, %v233, %v225
        %vm243 = vcmp.ge.s32.totalorder %v216, 3
        %vm244 = vcmp.ge.s32.totalorder %v217, 3
        %v245 = vsel %vm243, %v239, 0.0
        %v246 = vsel %vm244, %v235, 0.0
        %v247 = vsel %vm243, %v240, 0.0
        %v248 = vsel %vm244, %v236, 0.0
        %v249 = vsel %vm243, %v241, 0.0
        %v250 = vsel %vm244, %v237, 0.0
        %v251 = vsel %vm243, %v242, 0.0
        %v252 = vsel %vm244, %v238, 0.0
        %v253 = vmul.f32 %v245, -1.5024195e-13
        %v254 = vmul.f32 %v246, -1.5024195e-13
        %v255 = vmul.f32 %v247, -1.5024195e-13
        %v256 = vmul.f32 %v248, -1.5024195e-13
        %v257 = vmul.f32 %v249, -1.5024195e-13
        %v258 = vmul.f32 %v250, -1.5024195e-13
        %v259 = vmul.f32 %v251, -1.5024195e-13
        %v260 = vmul.f32 %v252, -1.5024195e-13
        %v261 = vadd.f32 %v207, %v253
        %v262 = vadd.f32 %v208, %v254
        %v263 = vadd.f32 %v209, %v255
        %v264 = vadd.f32 %v210, %v256
        %v265 = vadd.f32 %v211, %v257
        %v266 = vadd.f32 %v212, %v258
        %v267 = vadd.f32 %v213, %v259
        %v268 = vadd.f32 %v214, %v260
        %269 = vrot.lane.b32.xlu0 %v207, 2
        %v270 = vpop.permute.xlu0 %269
        %271 = vrot.lane.b32.xlu0 %v209, 2
        %v272 = vpop.permute.xlu0 %271
        %273 = vrot.lane.b32.xlu0 %v211, 2
        %v274 = vpop.permute.xlu0 %273
        %275 = vrot.lane.b32.xlu0 %v213, 2
        %v276 = vpop.permute.xlu0 %275
        %277 = vrot.lane.b32.xlu0 %v208, 2
        %v278 = vpop.permute.xlu0 %277
        %279 = vrot.lane.b32.xlu0 %v210, 2
        %v280 = vpop.permute.xlu0 %279
        %281 = vrot.lane.b32.xlu0 %v212, 2
        %v282 = vpop.permute.xlu0 %281
        %283 = vrot.lane.b32.xlu0 %v214, 2
        %v284 = vpop.permute.xlu0 %283
        %vm285 = vcmp.lt.s32.totalorder %v216, 2
        %v286 = vsel %vm285, %v270, %v278
        %v287 = vsel %vm285, %v272, %v280
        %v288 = vsel %vm285, %v274, %v282
        %v289 = vsel %vm285, %v276, %v284
        %v290 = vsel %vm285, %v278, %v270
        %v291 = vsel %vm285, %v280, %v272
        %v292 = vsel %vm285, %v282, %v274
        %v293 = vsel %vm285, %v284, %v276
        %vm294 = vcmp.ge.s32.totalorder %v216, 2
        %vm295 = vcmp.ge.s32.totalorder %v217, 2
        %v296 = vsel %vm294, %v290, 0.0
        %v297 = vsel %vm295, %v286, 0.0
        %v298 = vsel %vm294, %v291, 0.0
        %v299 = vsel %vm295, %v287, 0.0
        %v300 = vsel %vm294, %v292, 0.0
        %v301 = vsel %vm295, %v288, 0.0
        %v302 = vsel %vm294, %v293, 0.0
        %v303 = vsel %vm295, %v289, 0.0
        %v304 = vmul.f32 %v296, 1.0258677e-09
        %v305 = vmul.f32 %v297, 1.0258677e-09
        %v306 = vmul.f32 %v298, 1.0258677e-09
        %v307 = vmul.f32 %v299, 1.0258677e-09
        %v308 = vmul.f32 %v300, 1.0258677e-09
        %v309 = vmul.f32 %v301, 1.0258677e-09
        %v310 = vmul.f32 %v302, 1.0258677e-09
        %v311 = vmul.f32 %v303, 1.0258677e-09
        %v312 = vadd.f32 %v261, %v304
        %v313 = vadd.f32 %v262, %v305
        %v314 = vadd.f32 %v263, %v306
        %v315 = vadd.f32 %v264, %v307
        %v316 = vadd.f32 %v265, %v308
        %v317 = vadd.f32 %v266, %v309
        %v318 = vadd.f32 %v267, %v310
        %v319 = vadd.f32 %v268, %v311
        %320 = vrot.lane.b32.xlu0 %v207, 1
        %v321 = vpop.permute.xlu0 %320
        %322 = vrot.lane.b32.xlu0 %v209, 1
        %v323 = vpop.permute.xlu0 %322
        %324 = vrot.lane.b32.xlu0 %v211, 1
        %v325 = vpop.permute.xlu0 %324
        %326 = vrot.lane.b32.xlu0 %v213, 1
        %v327 = vpop.permute.xlu0 %326
        %328 = vrot.lane.b32.xlu0 %v208, 1
        %v329 = vpop.permute.xlu0 %328
        %330 = vrot.lane.b32.xlu0 %v210, 1
        %v331 = vpop.permute.xlu0 %330
        %332 = vrot.lane.b32.xlu0 %v212, 1
        %v333 = vpop.permute.xlu0 %332
        %334 = vrot.lane.b32.xlu0 %v214, 1
        %v335 = vpop.permute.xlu0 %334
        %vm336 = vcmp.lt.s32.totalorder %v216, 1
        %v337 = vsel %vm336, %v321, %v329
        %v338 = vsel %vm336, %v323, %v331
        %v339 = vsel %vm336, %v325, %v333
        %v340 = vsel %vm336, %v327, %v335
        %v341 = vsel %vm336, %v329, %v321
        %v342 = vsel %vm336, %v331, %v323
        %v343 = vsel %vm336, %v333, %v325
        %v344 = vsel %vm336, %v335, %v327
        %vm345 = vcmp.ge.s32.totalorder %v216, 1
        %vm346 = vcmp.ge.s32.totalorder %v217, 1
        %v347 = vsel %vm345, %v341, 0.0
        %v348 = vsel %vm346, %v337, 0.0
        %v349 = vsel %vm345, %v342, 0.0
        %v350 = vsel %vm346, %v338, 0.0
        %v351 = vsel %vm345, %v343, 0.0
        %v352 = vsel %vm346, %v339, 0.0
        %v353 = vsel %vm345, %v344, 0.0
        %v354 = vsel %vm346, %v340, 0.0
        %v355 = vmul.f32 %v347, -1.0359352e-08
        %v356 = vmul.f32 %v348, -1.0359352e-08
        %v357 = vmul.f32 %v349, -1.0359352e-08
        %v358 = vmul.f32 %v350, -1.0359352e-08
        %v359 = vmul.f32 %v351, -1.0359352e-08
        %v360 = vmul.f32 %v352, -1.0359352e-08
        %v361 = vmul.f32 %v353, -1.0359352e-08
        %v362 = vmul.f32 %v354, -1.0359352e-08
        %v363 = vadd.f32 %v312, %v355
        %v364 = vadd.f32 %v313, %v356
        %v365 = vadd.f32 %v314, %v357
        %v366 = vadd.f32 %v315, %v358
        %v367 = vadd.f32 %v316, %v359
        %v368 = vadd.f32 %v317, %v360
        %v369 = vadd.f32 %v318, %v361
        %v370 = vadd.f32 %v319, %v362
        %371 = vrot.lane.b32.xlu0 %v207, 127
        %v372 = vpop.permute.xlu0 %371
        %373 = vrot.lane.b32.xlu0 %v209, 127
        %v374 = vpop.permute.xlu0 %373
        %375 = vrot.lane.b32.xlu0 %v211, 127
        %v376 = vpop.permute.xlu0 %375
        %377 = vrot.lane.b32.xlu0 %v213, 127
        %v378 = vpop.permute.xlu0 %377
        %379 = vrot.lane.b32.xlu0 %v208, 127
        %v380 = vpop.permute.xlu0 %379
        %381 = vrot.lane.b32.xlu0 %v210, 127
        %v382 = vpop.permute.xlu0 %381
        %383 = vrot.lane.b32.xlu0 %v212, 127
        %v384 = vpop.permute.xlu0 %383
        %385 = vrot.lane.b32.xlu0 %v214, 127
        %v386 = vpop.permute.xlu0 %385
        %vm387 = vcmp.lt.s32.totalorder %v216, 127
        %v388 = vsel %vm387, %v372, %v380
        %v389 = vsel %vm387, %v374, %v382
        %v390 = vsel %vm387, %v376, %v384
        %v391 = vsel %vm387, %v378, %v386
        %v392 = vsel %vm387, %v380, %v372
        %v393 = vsel %vm387, %v382, %v374
        %v394 = vsel %vm387, %v384, %v376
        %v395 = vsel %vm387, %v386, %v378
        %vm396 = vcmp.lt.s32.totalorder %v216, 255
        %vm397 = vcmp.lt.s32.totalorder %v217, 255
        %v398 = vsel %vm396, %v388, 0.0
        %v399 = vsel %vm397, %v392, 0.0
        %v400 = vsel %vm396, %v389, 0.0
        %v401 = vsel %vm397, %v393, 0.0
        %v402 = vsel %vm396, %v390, 0.0
        %v403 = vsel %vm397, %v394, 0.0
        %v404 = vsel %vm396, %v391, 0.0
        %v405 = vsel %vm397, %v395, 0.0
        %v406 = vmul.f32 %v398, -2.7827534e-08
        %v407 = vmul.f32 %v399, -2.7827534e-08
        %v408 = vmul.f32 %v400, -2.7827534e-08
        %v409 = vmul.f32 %v401, -2.7827534e-08
        %v410 = vmul.f32 %v402, -2.7827534e-08
        %v411 = vmul.f32 %v403, -2.7827534e-08
        %v412 = vmul.f32 %v404, -2.7827534e-08
        %v413 = vmul.f32 %v405, -2.7827534e-08
        %v414 = vadd.f32 %v363, %v406
        %v415 = vadd.f32 %v364, %v407
        %v416 = vadd.f32 %v365, %v408
        %v417 = vadd.f32 %v366, %v409
        %v418 = vadd.f32 %v367, %v410
        %v419 = vadd.f32 %v368, %v411
        %v420 = vadd.f32 %v369, %v412
        %v421 = vadd.f32 %v370, %v413
        %422 = vrot.lane.b32.xlu0 %v207, 126
        %v423 = vpop.permute.xlu0 %422
        %424 = vrot.lane.b32.xlu0 %v209, 126
        %v425 = vpop.permute.xlu0 %424
        %426 = vrot.lane.b32.xlu0 %v211, 126
        %v427 = vpop.permute.xlu0 %426
        %428 = vrot.lane.b32.xlu0 %v213, 126
        %v429 = vpop.permute.xlu0 %428
        %430 = vrot.lane.b32.xlu0 %v208, 126
        %v431 = vpop.permute.xlu0 %430
        %432 = vrot.lane.b32.xlu0 %v210, 126
        %v433 = vpop.permute.xlu0 %432
        %434 = vrot.lane.b32.xlu0 %v212, 126
        %v435 = vpop.permute.xlu0 %434
        %436 = vrot.lane.b32.xlu0 %v214, 126
        %v437 = vpop.permute.xlu0 %436
        %vm438 = vcmp.lt.s32.totalorder %v216, 126
        %v439 = vsel %vm438, %v423, %v431
        %v440 = vsel %vm438, %v425, %v433
        %v441 = vsel %vm438, %v427, %v435
        %v442 = vsel %vm438, %v429, %v437
        %v443 = vsel %vm438, %v431, %v423
        %v444 = vsel %vm438, %v433, %v425
        %v445 = vsel %vm438, %v435, %v427
        %v446 = vsel %vm438, %v437, %v429
        %vm447 = vcmp.lt.s32.totalorder %v216, 254
        %vm448 = vcmp.lt.s32.totalorder %v217, 254
        %v449 = vsel %vm447, %v439, 0.0
        %v450 = vsel %vm448, %v443, 0.0
        %v451 = vsel %vm447, %v440, 0.0
        %v452 = vsel %vm448, %v444, 0.0
        %v453 = vsel %vm447, %v441, 0.0
        %v454 = vsel %vm448, %v445, 0.0
        %v455 = vsel %vm447, %v442, 0.0
        %v456 = vsel %vm448, %v446, 0.0
        %v457 = vmul.f32 %v449, 1.0359352e-08
        %v458 = vmul.f32 %v450, 1.0359352e-08
        %v459 = vmul.f32 %v451, 1.0359352e-08
        %v460 = vmul.f32 %v452, 1.0359352e-08
        %v461 = vmul.f32 %v453, 1.0359352e-08
        %v462 = vmul.f32 %v454, 1.0359352e-08
        %v463 = vmul.f32 %v455, 1.0359352e-08
        %v464 = vmul.f32 %v456, 1.0359352e-08
        %v465 = vadd.f32 %v414, %v457
        %v466 = vadd.f32 %v415, %v458
        %v467 = vadd.f32 %v416, %v459
        %v468 = vadd.f32 %v417, %v460
        %v469 = vadd.f32 %v418, %v461
        %v470 = vadd.f32 %v419, %v462
        %v471 = vadd.f32 %v420, %v463
        %v472 = vadd.f32 %v421, %v464
        %473 = vrot.lane.b32.xlu0 %v207, 125
        %v474 = vpop.permute.xlu0 %473
        %475 = vrot.lane.b32.xlu0 %v209, 125
        %v476 = vpop.permute.xlu0 %475
        %477 = vrot.lane.b32.xlu0 %v211, 125
        %v478 = vpop.permute.xlu0 %477
        %479 = vrot.lane.b32.xlu0 %v213, 125
        %v480 = vpop.permute.xlu0 %479
        %481 = vrot.lane.b32.xlu0 %v208, 125
        %v482 = vpop.permute.xlu0 %481
        %483 = vrot.lane.b32.xlu0 %v210, 125
        %v484 = vpop.permute.xlu0 %483
        %485 = vrot.lane.b32.xlu0 %v212, 125
        %v486 = vpop.permute.xlu0 %485
        %487 = vrot.lane.b32.xlu0 %v214, 125
        %v488 = vpop.permute.xlu0 %487
        %vm489 = vcmp.lt.s32.totalorder %v216, 125
        %v490 = vsel %vm489, %v474, %v482
        %v491 = vsel %vm489, %v476, %v484
        %v492 = vsel %vm489, %v478, %v486
        %v493 = vsel %vm489, %v480, %v488
        %v494 = vsel %vm489, %v482, %v474
        %v495 = vsel %vm489, %v484, %v476
        %v496 = vsel %vm489, %v486, %v478
        %v497 = vsel %vm489, %v488, %v480
        %vm498 = vcmp.lt.s32.totalorder %v216, 253
        %vm499 = vcmp.lt.s32.totalorder %v217, 253
        %v500 = vsel %vm498, %v490, 0.0
        %v501 = vsel %vm499, %v494, 0.0
        %v502 = vsel %vm498, %v491, 0.0
        %v503 = vsel %vm499, %v495, 0.0
        %v504 = vsel %vm498, %v492, 0.0
        %v505 = vsel %vm499, %v496, 0.0
        %v506 = vsel %vm498, %v493, 0.0
        %v507 = vsel %vm499, %v497, 0.0
        %v508 = vmul.f32 %v500, -9.32888e-11
        %v509 = vmul.f32 %v501, -9.32888e-11
        %v510 = vmul.f32 %v502, -9.32888e-11
        %v511 = vmul.f32 %v503, -9.32888e-11
        %v512 = vmul.f32 %v504, -9.32888e-11
        %v513 = vmul.f32 %v505, -9.32888e-11
        %v514 = vmul.f32 %v506, -9.32888e-11
        %v515 = vmul.f32 %v507, -9.32888e-11
        %v516 = vadd.f32 %v465, %v508
        %v517 = vadd.f32 %v466, %v509
        %v518 = vadd.f32 %v467, %v510
        %v519 = vadd.f32 %v468, %v511
        %v520 = vadd.f32 %v469, %v512
        %v521 = vadd.f32 %v470, %v513
        %v522 = vadd.f32 %v471, %v514
        %v523 = vadd.f32 %v472, %v515
        %v524 = vld [vmem:[%s178] sm:$0xff]
        %v525 = vld [vmem:[%s178 + $0x8] sm:$0xff]
        %v526 = vld [vmem:[%s178 + $0x10] sm:$0xff]
        %v527 = vld [vmem:[%s178 + $0x18] sm:$0xff]
        %v528 = vld [vmem:[%s178 + $0x20] sm:$0xff]
        %v529 = vld [vmem:[%s178 + $0x28] sm:$0xff]
        %v530 = vld [vmem:[%s178 + $0x30] sm:$0xff]
        %v531 = vld [vmem:[%s178 + $0x38] sm:$0xff]
        %v532 = vadd.f32 %v516, %v524
        %v533 = vadd.f32 %v517, %v525
        %v534 = vadd.f32 %v518, %v526
        %v535 = vadd.f32 %v519, %v527
        %v536 = vadd.f32 %v520, %v528
        %v537 = vadd.f32 %v521, %v529
        %v538 = vadd.f32 %v522, %v530
        %v539 = vadd.f32 %v523, %v531
        %540 = vst [vmem:[%s203] sm:$0xff] %v532
        %541 = vst [vmem:[%s203 + $0x8] sm:$0xff] %v533
        %542 = vst [vmem:[%s203 + $0x10] sm:$0xff] %v534
        %543 = vst [vmem:[%s203 + $0x18] sm:$0xff] %v535
        %544 = vst [vmem:[%s203 + $0x20] sm:$0xff] %v536
        %545 = vst [vmem:[%s203 + $0x28] sm:$0xff] %v537
        %546 = vst [vmem:[%s203 + $0x30] sm:$0xff] %v538
        %547 = vst [vmem:[%s203 + $0x38] sm:$0xff] %v539
        %s548 = sand.u32 %s82, 1
        %s549 = scalar_lea.sflag [#allocation4], %s548
        %s550 = sand.u32 %s82, 1
        %s551 = smul.addr %s550, 64
        %s552 = scalar_lea.vmem [#allocation7], %s551
        // Predicated region
        $region37: #{tpu_custom_call.1} parent=27 // pred_check
          %p553 = pneg %p92
        $region38: #{tpu_custom_call.1} parent=27 // pred_check_branch
          %555 = sbr.rel (%p553) target = $region40
        $region39: #{tpu_custom_call.1} parent=27 // pred_region
          %s556 = smul.u32 4, %s22
          %s558 = ssub.s32 1024, 1024
          %559 = vsyncadd %s549, %s558
          %s560 = smul.addr %s556, 2
          %s561 = smul.addr %s560, 128
          %s562 = scalar_lea.hbm %s2, %s561
          %s563 = sshll.u32 %s552, 4
          %s564 = int_to_ptr.vmem [resolvable:$true] %s563
          %569 = dma.vmem_to_hbm [thread:$0]  %s564, 1024, %s562, %s549, 256, 256, 16
        $region40: #{tpu_custom_call.1} parent=27 // pred_fallthru
          _
      $region28: #{tpu_custom_call.1} parent=5 // pred_fallthru
        _
      %p570 = scmp.le.s32.totalorder 2, %s17
      // Predicated region
      $region41: #{tpu_custom_call.1} parent=5 // pred_check
        %p571 = pneg %p570
      $region42: #{tpu_custom_call.1} parent=5 // pred_check_branch
        %573 = sbr.rel (%p571) target = $region44
      $region43: #{tpu_custom_call.1} parent=5 // pred_region
        %s574 = ssub.s32 %s17, 2
        // Predicated region
        $region45: #{tpu_custom_call.1} parent=43 // pred_check
          %p575 = pneg %p98
        $region46: #{tpu_custom_call.1} parent=43 // pred_check_branch
          %577 = sbr.rel (%p575) target = $region48
        $region47: #{tpu_custom_call.1} parent=43 // pred_region
          %s578 = sand.u32 %s83, 1
          %s579 = scalar_lea.sflag [#allocation4], %s578
          %s580 = sand.u32 %s83, 1
          %s581 = smul.addr %s580, 64
          %s582 = scalar_lea.vmem [#allocation7], %s581
          %583 = dma.done %s579, 1024
        $region48: #{tpu_custom_call.1} parent=43 // pred_fallthru
          _
      $region44: #{tpu_custom_call.1} parent=5 // pred_fallthru
        _
    $region6: #{tpu_custom_call.1} parent=1 // loop_footer
      %s21 = sadd.s32 1, %s17
    $region7: #{tpu_custom_call.1} parent=1 // loop_footer_branch
      %16 = sbr.rel target = $region3
    $region8: #{tpu_custom_call.1} parent=1 // loop_exit
      _
    %584 = vsyncpa [#allocation3], 1
    %s585 = scalar_lea.sflag [#allocation3], 1
    %586 = vsyncpa %s585, 1
    %587 = vsyncpa [#allocation6], 1
    %s588 = scalar_lea.sflag [#allocation6], 1
    %589 = vsyncpa %s588, 1
    %590 = vsyncpa [#allocation4], 1
    %s591 = scalar_lea.sflag [#allocation4], 1
    %592 = vsyncpa %s591, 1

</llo_original>
